<compile_context>
chip_gen: v6e
topology: v6e:2x2x1
jax: 0.10.0
libtpu: 0.0.40
codegen_flags: <defaults>
</compile_context>

<pallas_src>
import functools

import jax
import jax.numpy as jnp
from jax.experimental import pallas as pl
from jax.experimental.pallas import tpu as pltpu


def _conv3x3_kernel(x_ref, m_ref, b_ref, o_ref, xp_ref):
    # x_ref : (1, H, W*Cin)      f32  one image, (w, cin) folded on the lane axis
    # m_ref : (3, W*Cin, W*Cout) bf16 block-Toeplitz weights, one (K, N) slab per dh
    # b_ref : (1, W*Cout)        f32  bias tiled along the folded (w, cout) lane axis
    # o_ref : (1, H, W*Cout)     f32  lane-dense output slab
    # xp_ref: (Hp, W*Cin)        f32  scratch: row-padded copy of the image (row 0 and
    #                                 rows >= H+1 stay zero == the padding=1 border)
    _, H, _ = o_ref.shape

    # In-kernel zero padding: the W-direction border is handled entirely by the weight
    # matrix (out-of-range taps were dropped when it was built); the H-direction border
    # comes from the zero rows of this scratch.  Re-zeroed every step so the batch grid
    # axis stays truly "parallel" (megacore-safe); it is only a few vregs.
    xp_ref[...] = jnp.zeros_like(xp_ref)
    xp_ref[1:1 + H, :] = x_ref[0]

    acc = jnp.zeros(o_ref.shape[1:], jnp.float32)                 # (H, W*Cout)
    for dh in range(3):
        # Output row h of tap dh reads padded row h + dh: a plain sublane-offset read,
        # no reshape / relayout of 9 shifted patches as before.
        lhs = xp_ref[dh:dh + H, :].astype(jnp.bfloat16)           # (H, W*Cin)  bf16
        acc = acc + jnp.dot(lhs, m_ref[dh],                       # (W*Cin, W*Cout) bf16
                            preferred_element_type=jnp.float32)
    # f32 epilogue (bias add + cast) -- safe on v5e which has no bf16 VPU.
    o_ref[...] = (acc + b_ref[...]).astype(o_ref.dtype)[None]


def _build_toeplitz_weights(weight_oihw, W):
    """Fold the (dw, cin) taps of the 3x3 kernel into per-dh (W*Cin, W*Cout) matrices."""
    Cout, Cin, KH, KW = weight_oihw.shape
    assert (KH, KW) == (3, 3), "module fixes kernel_size=3, padding=1"
    w_hwio = jnp.transpose(weight_oihw, (2, 3, 1, 0))             # (3, 3, Cin, Cout)
    # sel[dw, p, w] = 1 iff input column p feeds output column w through tap dw, i.e.
    # p == w + dw - 1.  Out-of-range taps hit the zero padding and are simply dropped.
    p = jnp.arange(W)
    sel = (p[None, :, None] ==
           (p[None, None, :] + jnp.arange(3)[:, None, None] - 1)).astype(w_hwio.dtype)
    m = jnp.einsum("apq,daio->dpiqo", sel, w_hwio)                # (3, W, Cin, W, Cout)
    return m.reshape(3, W * Cin, W * Cout).astype(jnp.bfloat16)


@jax.jit
def _gauge_conv_impl(x_nchw, weight_oihw, bias):
    N, Cin, H, W = x_nchw.shape
    Cout = weight_oihw.shape[0]
    WCi, WCo = W * Cin, W * Cout
    Hp = ((H + 2 + 7) // 8) * 8          # sublane-aligned padded-row count (>= H + 2)

    m = _build_toeplitz_weights(weight_oihw, W)                   # (3, WCi, WCo) bf16
    b_fold = jnp.tile(bias.astype(jnp.float32), W).reshape(1, WCo)

    # NCHW -> (N, H, W*Cin): channels (and W) folded onto the lane axis.  One fused XLA
    # relayout pass; the separate jnp.pad pass of the old version is gone (padding now
    # happens in-kernel).
    # TODO(synk): for an end-to-end HBM-bound pipeline, keep activations in NHWC so this
    # boundary transpose (and the one after the kernel) disappears entirely.
    x_slab = jnp.transpose(x_nchw, (0, 2, 3, 1)).reshape(N, H, WCi)

    # TODO(synk): at production H/W add an H-tile grid axis (haloed rows via manual DMA
    # or a row-padded input) so blocks stay well under v7x's 64 MiB VMEM and every core
    # gets several grid steps for DMA/compute overlap; at H=W=16 one image per step is
    # already launch/overhead-bound (~0.6 MFLOP total).
    out_slab = pl.pallas_call(
        _conv3x3_kernel,
        out_shape=jax.ShapeDtypeStruct((N, H, WCo), jnp.float32),
        grid_spec=pltpu.PrefetchScalarGridSpec(
            num_scalar_prefetch=0,
            grid=(N,),
            in_specs=[
                pl.BlockSpec((1, H, WCi), lambda n: (n, 0, 0)),
                pl.BlockSpec((3, WCi, WCo), lambda n: (0, 0, 0)),
                pl.BlockSpec((1, WCo), lambda n: (0, 0)),
            ],
            out_specs=pl.BlockSpec((1, H, WCo), lambda n: (n, 0, 0)),
            scratch_shapes=[pltpu.VMEM((Hp, WCi), jnp.float32)],
        ),
        compiler_params=pltpu.CompilerParams(
            dimension_semantics=("parallel",),
            # Explicit scoped-VMEM budget with double-buffering headroom (tiny blocks
            # here, but sized so larger channel/spatial configs still fit v7x's 64 MiB).
            vmem_limit_bytes=32 * 1024 * 1024,
        ),
    )(x_slab, m, b_fold)

    # (N, H, W*Cout) -> (N, H, W, Cout) is a free reshape; only the transpose back to
    # the module's NCHW contract costs an HBM pass.
    return out_slab.reshape(N, H, W, Cout).transpose(0, 3, 1, 2).astype(x_nchw.dtype)


def gauge_equivariant_conv(x_nchw, weight_oihw, bias, connection=None):
    """Forward pass of GaugeEquivariantConv (connection is unused, as in the module)."""
    del connection
    return _gauge_conv_impl(x_nchw, weight_oihw, bias)


if __name__ == "__main__":
    # Module config: in_channels=4, out_channels=8, kernel_size=3, padding=1
    N, Cin, Cout, H, W = 2, 4, 8, 16, 16

    key = jax.random.PRNGKey(0)
    kx, kw, kb = jax.random.split(key, 3)

    # Deterministic parameter init (PyTorch Conv2d-style uniform bounds).
    fan_in = Cin * 3 * 3
    bound = 1.0 / (fan_in ** 0.5)
    weight = jax.random.uniform(kw, (Cout, Cin, 3, 3), jnp.float32, -bound, bound)
    bias = jax.random.uniform(kb, (Cout,), jnp.float32, -bound, bound)
    x = jax.random.normal(kx, (N, Cin, H, W), jnp.float32)

    out = jax.block_until_ready(gauge_equivariant_conv(x, weight, bias))

    # Cross-check against XLA's f32 conv (bf16 matmul inputs -> loosened tolerance).
    ref = jax.lax.conv_general_dilated(
        x, weight, window_strides=(1, 1), padding=((1, 1), (1, 1)),
        dimension_numbers=("NCHW", "OIHW", "NCHW"),
    ) + bias[None, :, None, None]
    assert out.shape == (N, Cout, H, W)
    assert jnp.allclose(out, ref, atol=5e-2, rtol=5e-2), float(jnp.max(jnp.abs(out - ref)))

    print("KERNEL_OK")
</pallas_src>

<mosaic_0001>
module attributes {stable_mosaic.version = 11 : i64} {
  func.func @_conv3x3_kernel(%arg0: i32, %arg1: memref<1x16x64xf32, #tpu.memory_space<vmem>>, %arg2: memref<3x64x128xbf16, #tpu.memory_space<vmem>>, %arg3: memref<1x128xf32, #tpu.memory_space<vmem>>, %arg4: memref<1x16x128xf32, #tpu.memory_space<vmem>>, %arg5: memref<24x64xf32, #tpu.memory_space<vmem>>) attributes {dimension_semantics = [#tpu.dimension_semantics<parallel>], iteration_bounds = array<i64: 2>, scalar_prefetch = 0 : i64, scratch_operands = 1 : i64, tpu.core_type = #tpu.core_type<tc>, window_params = [{transform_indices = @transform_0, window_bounds = array<i64: 1, 16, 64>}, {pipeline_mode = #tpu.pipeline_mode<synchronous>, transform_indices = @transform_1, window_bounds = array<i64: 3, 64, 128>}, {pipeline_mode = #tpu.pipeline_mode<synchronous>, transform_indices = @transform_2, window_bounds = array<i64: 1, 128>}, {transform_indices = @transform_3, window_bounds = array<i64: 1, 16, 128>}]} {
    %cst = arith.constant 0.000000e+00 : f32
    %0 = vector.broadcast %cst : f32 to vector<24x64xf32>
    %c0 = arith.constant 0 : index
    %c0_0 = arith.constant 0 : index
    %1 = vector.load %arg5[%c0, %c0_0] : memref<24x64xf32, #tpu.memory_space<vmem>>, vector<24x64xf32>
    tpu.vector_store %arg5[%c0, %c0_0], %0 {strides = array<i32>} : memref<24x64xf32, #tpu.memory_space<vmem>>, vector<24x64xf32>,
    %c0_1 = arith.constant 0 : index
    %c0_2 = arith.constant 0 : index
    %c0_3 = arith.constant 0 : index
    %2 = vector.load %arg1[%c0_1, %c0_2, %c0_3] : memref<1x16x64xf32, #tpu.memory_space<vmem>>, vector<1x16x64xf32>
    %3 = vector.shape_cast %2 : vector<1x16x64xf32> to vector<16x64xf32>
    %c1 = arith.constant 1 : index
    %c0_4 = arith.constant 0 : index
    %4 = vector.load %arg5[%c1, %c0_4] : memref<24x64xf32, #tpu.memory_space<vmem>>, vector<16x64xf32>
    tpu.vector_store %arg5[%c1, %c0_4], %3 {strides = array<i32>} : memref<24x64xf32, #tpu.memory_space<vmem>>, vector<16x64xf32>,
    %cst_5 = arith.constant 0.000000e+00 : f32
    %5 = vector.broadcast %cst_5 : f32 to vector<16x128xf32>
    %c0_6 = arith.constant 0 : index
    %c0_7 = arith.constant 0 : index
    %6 = vector.load %arg5[%c0_6, %c0_7] : memref<24x64xf32, #tpu.memory_space<vmem>>, vector<16x64xf32>
    %7 = arith.truncf %6 : vector<16x64xf32> to vector<16x64xbf16>
    %c0_8 = arith.constant 0 : index
    %c0_9 = arith.constant 0 : index
    %c0_10 = arith.constant 0 : index
    %8 = vector.load %arg2[%c0_8, %c0_9, %c0_10] : memref<3x64x128xbf16, #tpu.memory_space<vmem>>, vector<1x64x128xbf16>
    %9 = vector.shape_cast %8 : vector<1x64x128xbf16> to vector<64x128xbf16>
    %cst_11 = arith.constant dense<0.000000e+00> : vector<16x128xf32>
    %10 = tpu.matmul %7, %9, %cst_11 {dimension_numbers = #tpu.dot_dimension_numbers<[1], [0], [0], [1], [0, 0, 1, 1], [], []>} : vector<16x64xbf16>, vector<64x128xbf16>, vector<16x128xf32> -> vector<16x128xf32>
    %11 = arith.addf %5, %10 : vector<16x128xf32>
    %c1_12 = arith.constant 1 : index
    %c0_13 = arith.constant 0 : index
    %12 = vector.load %arg5[%c1_12, %c0_13] : memref<24x64xf32, #tpu.memory_space<vmem>>, vector<16x64xf32>
    %13 = arith.truncf %12 : vector<16x64xf32> to vector<16x64xbf16>
    %c1_14 = arith.constant 1 : index
    %c0_15 = arith.constant 0 : index
    %c0_16 = arith.constant 0 : index
    %14 = vector.load %arg2[%c1_14, %c0_15, %c0_16] : memref<3x64x128xbf16, #tpu.memory_space<vmem>>, vector<1x64x128xbf16>
    %15 = vector.shape_cast %14 : vector<1x64x128xbf16> to vector<64x128xbf16>
    %cst_17 = arith.constant dense<0.000000e+00> : vector<16x128xf32>
    %16 = tpu.matmul %13, %15, %cst_17 {dimension_numbers = #tpu.dot_dimension_numbers<[1], [0], [0], [1], [0, 0, 1, 1], [], []>} : vector<16x64xbf16>, vector<64x128xbf16>, vector<16x128xf32> -> vector<16x128xf32>
    %17 = arith.addf %11, %16 : vector<16x128xf32>
    %c2 = arith.constant 2 : index
    %c0_18 = arith.constant 0 : index
    %18 = vector.load %arg5[%c2, %c0_18] : memref<24x64xf32, #tpu.memory_space<vmem>>, vector<16x64xf32>
    %19 = arith.truncf %18 : vector<16x64xf32> to vector<16x64xbf16>
    %c2_19 = arith.constant 2 : index
    %c0_20 = arith.constant 0 : index
    %c0_21 = arith.constant 0 : index
    %20 = vector.load %arg2[%c2_19, %c0_20, %c0_21] : memref<3x64x128xbf16, #tpu.memory_space<vmem>>, vector<1x64x128xbf16>
    %21 = vector.shape_cast %20 : vector<1x64x128xbf16> to vector<64x128xbf16>
    %cst_22 = arith.constant dense<0.000000e+00> : vector<16x128xf32>
    %22 = tpu.matmul %19, %21, %cst_22 {dimension_numbers = #tpu.dot_dimension_numbers<[1], [0], [0], [1], [0, 0, 1, 1], [], []>} : vector<16x64xbf16>, vector<64x128xbf16>, vector<16x128xf32> -> vector<16x128xf32>
    %23 = arith.addf %17, %22 : vector<16x128xf32>
    %c0_23 = arith.constant 0 : index
    %c0_24 = arith.constant 0 : index
    %24 = vector.load %arg3[%c0_23, %c0_24] : memref<1x128xf32, #tpu.memory_space<vmem>>, vector<1x128xf32>
    %25 = vector.broadcast %24 : vector<1x128xf32> to vector<16x128xf32>
    %26 = arith.addf %23, %25 : vector<16x128xf32>
    %27 = vector.shape_cast %26 : vector<16x128xf32> to vector<1x16x128xf32>
    %c0_25 = arith.constant 0 : index
    %c0_26 = arith.constant 0 : index
    %c0_27 = arith.constant 0 : index
    %28 = vector.load %arg4[%c0_25, %c0_26, %c0_27] : memref<1x16x128xf32, #tpu.memory_space<vmem>>, vector<1x16x128xf32>
    tpu.vector_store %arg4[%c0_25, %c0_26, %c0_27], %27 {strides = array<i32>} : memref<1x16x128xf32, #tpu.memory_space<vmem>>, vector<1x16x128xf32>,
    return
  }
  func.func @transform_0(%arg0: i32) -> (i32, i32, i32) {
    %c0_i32 = arith.constant 0 : i32
    %c0_i32_0 = arith.constant 0 : i32
    %c0_i32_1 = arith.constant 0 : i32
    return %arg0, %c0_i32, %c0_i32_0 : i32, i32, i32
  }
  func.func @transform_1(%arg0: i32) -> (i32, i32, i32) {
    %c0_i32 = arith.constant 0 : i32
    %c0_i32_0 = arith.constant 0 : i32
    %c0_i32_1 = arith.constant 0 : i32
    %c0_i32_2 = arith.constant 0 : i32
    return %c0_i32, %c0_i32_0, %c0_i32_1 : i32, i32, i32
  }
  func.func @transform_2(%arg0: i32) -> (i32, i32) {
    %c0_i32 = arith.constant 0 : i32
    %c0_i32_0 = arith.constant 0 : i32
    %c0_i32_1 = arith.constant 0 : i32
    return %c0_i32, %c0_i32_0 : i32, i32
  }
  func.func @transform_3(%arg0: i32) -> (i32, i32, i32) {
    %c0_i32 = arith.constant 0 : i32
    %c0_i32_0 = arith.constant 0 : i32
    %c0_i32_1 = arith.constant 0 : i32
    return %arg0, %c0_i32, %c0_i32_0 : i32, i32, i32
  }
}

</mosaic_0001>

<llo_original>
// kernel: tile.8
$region0: #{tile.8}
  #allocation0 [shape = 's32[1]{0}', space=sflag, size = 0x4, scoped, tag = 'scoped memory for tile.8']
  %s0 = inlined_call_operand.vmem [shape: f32[8], index: 0, kind: input, shape index: {}]
  %s1 = inlined_call_operand.vmem [shape: f32[16,8], index: 1, kind: output, shape index: {}]
  // Predicated region
  $region2: #{tile.8} parent=0 // pred_check
    _
  $region3: #{tile.8} parent=0 // pred_check_branch
    %3 = sbr.rel (0) target = $region5
  $region4: #{tile.8} parent=0 // pred_region
    _
  $region5: #{tile.8} parent=0 // pred_fallthru
    _
  %v4 = vld [vmem:[%s0] ss:$0 sm:$0xff]
  %5 = vst [vmem:[%s1] sm:$0xff] %v4
  %s6 = scalar_lea.vmem %s1, 8
  %7 = vst [vmem:[%s6] sm:$0xff] %v4

// kernel: tile.9
$region0: #{tile.9}
  %s0 = inlined_call_operand.vmem [shape: f32[16,8], index: 0, kind: input, shape index: {}]
  %s1 = inlined_call_operand.vmem [shape: f32[1,128], index: 1, kind: output, shape index: {}]
  $region1: #{tile.9} parent=0
    #allocation0 [shape = 'u8[4096]{0}', space=vmem, size = 0x1000, scoped, tag = 'scoped mem for output reshape']
    %v2 = vld [vmem:[%s0] sm:$0x1]
    %vm3 = vcmask 64512
    %4 = vst.msk [vmem:[#allocation0] sm:$0x1] %vm3, %v2
    %s5 = scalar_lea.vmem %s0, 15
    %v6 = vld [vmem:[%s5] sm:$0x1]
    %7 = vrot.lane.b32.xlu0 %v6, 120
    %v8 = vpop.permute.xlu0 %7
    %vm9 = vcmask 1048512
    %10 = vst.msk [vmem:[#allocation0] sm:$0x1] %vm9, %v8
    %s11 = scalar_lea.vmem %s0, 14
    %v12 = vld [vmem:[%s11] sm:$0x1]
    %13 = vrot.lane.b32.xlu0 %v12, 112
    %v14 = vpop.permute.xlu0 %13
    %vm15 = vcmask 982912
    %16 = vst.msk [vmem:[#allocation0] sm:$0x1] %vm15, %v14
    %s17 = scalar_lea.vmem %s0, 13
    %v18 = vld [vmem:[%s17] sm:$0x1]
    %19 = vrot.lane.b32.xlu0 %v18, 104
    %v20 = vpop.permute.xlu0 %19
    %vm21 = vcmask 917312
    %22 = vst.msk [vmem:[#allocation0] sm:$0x1] %vm21, %v20
    %s23 = scalar_lea.vmem %s0, 12
    %v24 = vld [vmem:[%s23] sm:$0x1]
    %25 = vrot.lane.b32.xlu0 %v24, 96
    %v26 = vpop.permute.xlu0 %25
    %vm27 = vcmask 851712
    %28 = vst.msk [vmem:[#allocation0] sm:$0x1] %vm27, %v26
    %s29 = scalar_lea.vmem %s0, 11
    %v30 = vld [vmem:[%s29] sm:$0x1]
    %31 = vrot.lane.b32.xlu0 %v30, 88
    %v32 = vpop.permute.xlu0 %31
    %vm33 = vcmask 786112
    %34 = vst.msk [vmem:[#allocation0] sm:$0x1] %vm33, %v32
    %s35 = scalar_lea.vmem %s0, 10
    %v36 = vld [vmem:[%s35] sm:$0x1]
    %37 = vrot.lane.b32.xlu0 %v36, 80
    %v38 = vpop.permute.xlu0 %37
    %vm39 = vcmask 720512
    %40 = vst.msk [vmem:[#allocation0] sm:$0x1] %vm39, %v38
    %s41 = scalar_lea.vmem %s0, 9
    %v42 = vld [vmem:[%s41] sm:$0x1]
    %43 = vrot.lane.b32.xlu0 %v42, 72
    %v44 = vpop.permute.xlu0 %43
    %vm45 = vcmask 654912
    %46 = vst.msk [vmem:[#allocation0] sm:$0x1] %vm45, %v44
    %s47 = scalar_lea.vmem %s0, 8
    %v48 = vld [vmem:[%s47] sm:$0x1]
    %49 = vrot.lane.b32.xlu0 %v48, 64
    %v50 = vpop.permute.xlu0 %49
    %vm51 = vcmask 589312
    %52 = vst.msk [vmem:[#allocation0] sm:$0x1] %vm51, %v50
    %s53 = scalar_lea.vmem %s0, 7
    %v54 = vld [vmem:[%s53] sm:$0x1]
    %55 = vrot.lane.b32.xlu0 %v54, 56
    %v56 = vpop.permute.xlu0 %55
    %vm57 = vcmask 523712
    %58 = vst.msk [vmem:[#allocation0] sm:$0x1] %vm57, %v56
    %s59 = scalar_lea.vmem %s0, 6
    %v60 = vld [vmem:[%s59] sm:$0x1]
    %61 = vrot.lane.b32.xlu0 %v60, 48
    %v62 = vpop.permute.xlu0 %61
    %vm63 = vcmask 458112
    %64 = vst.msk [vmem:[#allocation0] sm:$0x1] %vm63, %v62
    %s65 = scalar_lea.vmem %s0, 5
    %v66 = vld [vmem:[%s65] sm:$0x1]
    %67 = vrot.lane.b32.xlu0 %v66, 40
    %v68 = vpop.permute.xlu0 %67
    %vm69 = vcmask 392512
    %70 = vst.msk [vmem:[#allocation0] sm:$0x1] %vm69, %v68
    %s71 = scalar_lea.vmem %s0, 4
    %v72 = vld [vmem:[%s71] sm:$0x1]
    %73 = vrot.lane.b32.xlu0 %v72, 32
    %v74 = vpop.permute.xlu0 %73
    %vm75 = vcmask 326912
    %76 = vst.msk [vmem:[#allocation0] sm:$0x1] %vm75, %v74
    %s77 = scalar_lea.vmem %s0, 3
    %v78 = vld [vmem:[%s77] sm:$0x1]
    %79 = vrot.lane.b32.xlu0 %v78, 24
    %v80 = vpop.permute.xlu0 %79
    %vm81 = vcmask 261312
    %82 = vst.msk [vmem:[#allocation0] sm:$0x1] %vm81, %v80
    %s83 = scalar_lea.vmem %s0, 2
    %v84 = vld [vmem:[%s83] sm:$0x1]
    %85 = vrot.lane.b32.xlu0 %v84, 16
    %v86 = vpop.permute.xlu0 %85
    %vm87 = vcmask 195712
    %88 = vst.msk [vmem:[#allocation0] sm:$0x1] %vm87, %v86
    %s89 = scalar_lea.vmem %s0, 1
    %v90 = vld [vmem:[%s89] sm:$0x1]
    %91 = vrot.lane.b32.xlu0 %v90, 8
    %v92 = vpop.permute.xlu0 %91
    %vm93 = vcmask 130112
    %94 = vst.msk [vmem:[#allocation0] sm:$0x1] %vm93, %v92
    %s96 = sshll.u32 1, 1
    %s97 = ssub.s32 %s96, 1
    %v99 = vld [vmem:[#allocation0] sm:%s97]
    %s100 = sshll.u32 1, 1
    %s101 = ssub.s32 %s100, 1
    %102 = vst [vmem:[%s1] sm:%s101] %v99

// kernel: _gauge_conv_impl.1
$region0: #{_gauge_conv_impl.1}
  #allocation0 [shape = 'u32[]', space=smem, size = 0x4, offset = 0x4, fixed_abs, tag = 'smem constant byte address 0x4 - core index']
  #allocation1 [shape = 'u32[144,128]{1,0:T(1,128)}', space=vmem, size = 0x12000, scoped, tag = 'internal scratch']
  #allocation2 [shape = 'f32[24,64]{1,0:T(8,128)}', space=vmem, size = 0x3000, scoped, tag = 'scratch operand']
  %s0 = inlined_call_operand.vmem [shape: f32[2,16,64], index: 0, kind: input, shape index: {}]
  %s1 = inlined_call_operand.vmem [shape: bf16[3,64,128], index: 1, kind: input, shape index: {}]
  %s2 = inlined_call_operand.vmem [shape: f32[1,128], index: 2, kind: input, shape index: {}]
  %s3 = inlined_call_operand.vmem [shape: f32[2,16,128], index: 3, kind: output, shape index: {}]
  %s4 = sld [smem:[#allocation0]]
  $region45: #{_gauge_conv_impl.1} parent=0
    _
  %s6 = ssub.s32 1, %s4
  %s7 = scalar_select 0, %s6, %s4
  loop: start=0, step=1, limit=4
  $region2: #{_gauge_conv_impl.1} parent=0 // loop_pre_header
    _
  $region3: #{_gauge_conv_impl.1} parent=0 // loop_header
    %s9 = sphi 0, %s13
    %p10 = scmp.ge.s32.totalorder %s9, 4
    %s19 = sphi 0, %s21
    %s22 = sphi 0, %s19
    %s23 = sphi 0, %s22
    %s39 = sphi 0, %s23
    %s43 = sphi 0, %s43
    %s45 = sphi 0, %s43
    %s46 = sphi 0, %s45
    %s60 = sphi 0, %s46
    %s64 = sphi 0, %s64
    %s66 = sphi 0, %s64
    %s67 = sphi 0, %s66
    %s81 = sphi 0, %s67
    %s87 = sphi 0, %s89
    %s90 = sphi 0, %s87
    %s91 = sphi 0, %s90
    %s107 = sphi 0, %s91
  $region4: #{_gauge_conv_impl.1} parent=0 // loop_header_branch
    %12 = sbr.rel (%p10) target = $region8
  $region5: #{_gauge_conv_impl.1} parent=0 // loop_body
    %s14 = ssub.s32 %s9, 1
    %s15 = ssub.s32 %s9, 2
    %s16 = sadd.s32 %s9, 1
    %s17 = ssub.s32 %s9, %s16
    %p18 = scmp.eq.s32.totalorder %s17, 0
    %s20 = sadd.s32 %s19, 1
    %s21 = scalar_select %p18, %s19, %s20
    %p24 = pneg %p18
    %p25 = scmp.eq.s32.totalorder %s9, 1
    %p26 = por %p24, %p25
    %p27 = scmp.ne.s32.totalorder %s19, %s22
    %p28 = scmp.eq.s32.totalorder %s9, 0
    %p29 = por %p27, %p28
    %p30 = scmp.ne.s32.totalorder %s19, %s22
    %p31 = scmp.eq.s32.totalorder %s14, 1
    %p32 = por %p30, %p31
    %p33 = scmp.ne.s32.totalorder %s22, %s23
    %p34 = scmp.eq.s32.totalorder %s14, 0
    %p35 = por %p33, %p34
    %p36 = scmp.ne.s32.totalorder %s22, %s23
    %p37 = scmp.eq.s32.totalorder %s15, 1
    %p38 = por %p36, %p37
    %p40 = scmp.ne.s32.totalorder %s23, %s39
    %p41 = scmp.eq.s32.totalorder %s15, 0
    %p42 = por %p40, %p41
    %s44 = sadd.s32 %s43, 1
    %p47 = scmp.eq.s32.totalorder %s9, 1
    %p48 = scmp.ne.s32.totalorder %s43, %s45
    %p49 = scmp.eq.s32.totalorder %s9, 0
    %p50 = por %p48, %p49
    %p51 = scmp.ne.s32.totalorder %s43, %s45
    %p52 = scmp.eq.s32.totalorder %s14, 1
    %p53 = por %p51, %p52
    %p54 = scmp.ne.s32.totalorder %s45, %s46
    %p55 = scmp.eq.s32.totalorder %s14, 0
    %p56 = por %p54, %p55
    %p57 = scmp.ne.s32.totalorder %s45, %s46
    %p58 = scmp.eq.s32.totalorder %s15, 1
    %p59 = por %p57, %p58
    %p61 = scmp.ne.s32.totalorder %s46, %s60
    %p62 = scmp.eq.s32.totalorder %s15, 0
    %p63 = por %p61, %p62
    %s65 = sadd.s32 %s64, 1
    %p68 = scmp.eq.s32.totalorder %s9, 1
    %p69 = scmp.ne.s32.totalorder %s64, %s66
    %p70 = scmp.eq.s32.totalorder %s9, 0
    %p71 = por %p69, %p70
    %p72 = scmp.ne.s32.totalorder %s64, %s66
    %p73 = scmp.eq.s32.totalorder %s14, 1
    %p74 = por %p72, %p73
    %p75 = scmp.ne.s32.totalorder %s66, %s67
    %p76 = scmp.eq.s32.totalorder %s14, 0
    %p77 = por %p75, %p76
    %p78 = scmp.ne.s32.totalorder %s66, %s67
    %p79 = scmp.eq.s32.totalorder %s15, 1
    %p80 = por %p78, %p79
    %p82 = scmp.ne.s32.totalorder %s67, %s81
    %p83 = scmp.eq.s32.totalorder %s15, 0
    %p84 = por %p82, %p83
    %s85 = ssub.s32 %s9, %s16
    %p86 = scmp.eq.s32.totalorder %s85, 0
    %s88 = sadd.s32 %s87, 1
    %s89 = scalar_select %p86, %s87, %s88
    %p92 = pneg %p86
    %p93 = scmp.eq.s32.totalorder %s9, 1
    %p94 = por %p92, %p93
    %p95 = scmp.ne.s32.totalorder %s87, %s90
    %p96 = scmp.eq.s32.totalorder %s9, 0
    %p97 = por %p95, %p96
    %p98 = scmp.ne.s32.totalorder %s87, %s90
    %p99 = scmp.eq.s32.totalorder %s14, 1
    %p100 = por %p98, %p99
    %p101 = scmp.ne.s32.totalorder %s90, %s91
    %p102 = scmp.eq.s32.totalorder %s14, 0
    %p103 = por %p101, %p102
    %p104 = scmp.ne.s32.totalorder %s90, %s91
    %p105 = scmp.eq.s32.totalorder %s15, 1
    %p106 = por %p104, %p105
    %p108 = scmp.ne.s32.totalorder %s91, %s107
    %p109 = scmp.eq.s32.totalorder %s15, 0
    %p110 = por %p108, %p109
    %p111 = scmp.le.s32.totalorder 1, %s9
    %p112 = scmp.lt.s32.totalorder %s9, 3
    %p113 = pnand %p111, %p112
    %p114 = pneg %p113
    // Predicated region
    $region9: #{_gauge_conv_impl.1} parent=5 // pred_check
      _
    $region10: #{_gauge_conv_impl.1} parent=5 // pred_check_branch
      %116 = sbr.rel (%p113) target = $region12
    $region11: #{_gauge_conv_impl.1} parent=5 // pred_region
      %s117 = ssub.s32 %s9, 1
      // Predicated region
      $region13: #{_gauge_conv_impl.1} parent=11 // pred_check
        %p118 = pneg %p56
      $region14: #{_gauge_conv_impl.1} parent=11 // pred_check_branch
        %120 = sbr.rel (%p118) target = $region16
      $region15: #{_gauge_conv_impl.1} parent=11 // pred_region
        _
      $region16: #{_gauge_conv_impl.1} parent=11 // pred_fallthru
        _
      // Predicated region
      $region17: #{_gauge_conv_impl.1} parent=11 // pred_check
        %p121 = pneg %p77
      $region18: #{_gauge_conv_impl.1} parent=11 // pred_check_branch
        %123 = sbr.rel (%p121) target = $region20
      $region19: #{_gauge_conv_impl.1} parent=11 // pred_region
        _
      $region20: #{_gauge_conv_impl.1} parent=11 // pred_fallthru
        _
    $region12: #{_gauge_conv_impl.1} parent=5 // pred_fallthru
      _
    %p124 = scmp.lt.s32.totalorder %s9, 2
    // Predicated region
    $region21: #{_gauge_conv_impl.1} parent=5 // pred_check
      %p125 = pneg %p124
    $region22: #{_gauge_conv_impl.1} parent=5 // pred_check_branch
      %127 = sbr.rel (%p125) target = $region24
    $region23: #{_gauge_conv_impl.1} parent=5 // pred_region
      // Predicated region
      $region25: #{_gauge_conv_impl.1} parent=23 // pred_check
        %p128 = pneg %p29
      $region26: #{_gauge_conv_impl.1} parent=23 // pred_check_branch
        %130 = sbr.rel (%p128) target = $region28
      $region27: #{_gauge_conv_impl.1} parent=23 // pred_region
        %p131 = scmp.lt.s32.totalorder %s9, 1
        %s132 = scalar_select %p131, %s9, 1
        %s133 = smul.addr %s132, 2
        %s134 = smul.addr %s133, 8
        %s135 = scalar_lea.vmem %s0, %s134
      $region28: #{_gauge_conv_impl.1} parent=23 // pred_fallthru
        _
    $region24: #{_gauge_conv_impl.1} parent=5 // pred_fallthru
      _
    %p136 = scmp.le.s32.totalorder 1, %s9
    %p137 = scmp.lt.s32.totalorder %s9, 3
    %p138 = pnand %p136, %p137
    %p139 = pneg %p138
    // Predicated region
    $region29: #{_gauge_conv_impl.1} parent=5 // pred_check
      _
    $region30: #{_gauge_conv_impl.1} parent=5 // pred_check_branch
      %141 = sbr.rel (%p138) target = $region32
    $region31: #{_gauge_conv_impl.1} parent=5 // pred_region
      %s142 = ssub.s32 %s9, 1
      %p143 = scmp.lt.s32.totalorder %s14, 1
      %s144 = scalar_select %p143, %s14, 1
      %s145 = smul.addr %s144, 2
      %s146 = smul.addr %s145, 8
      %s147 = scalar_lea.vmem %s0, %s146
      %p148 = pneg %p35
      %p149 = pneg %p32
      %p150 = pneg %p56
      %p151 = pneg %p53
      %p152 = pneg %p77
      %p153 = pneg %p74
      %p154 = pneg %p103
      %p155 = pneg %p100
      %p156 = scmp.lt.s32.totalorder %s14, 1
      %s157 = scalar_select %p156, %s14, 1
      %s158 = smul.addr %s157, 2
      %s159 = smul.addr %s158, 8
      %s160 = scalar_lea.vmem %s3, %s159
      %p161 = scmp.lt.s32.totalorder %s14, 1
      %s162 = scalar_select %p161, %s14, 1
      %s163 = smul.addr %s162, 2
      %s164 = smul.addr %s163, 8
      %s165 = scalar_lea.vmem %s0, %s164
      %p166 = scmp.lt.s32.totalorder %s14, 1
      %s167 = scalar_select %p166, %s14, 1
      %s168 = smul.addr %s167, 2
      %s169 = smul.addr %s168, 8
      %s170 = scalar_lea.vmem %s3, %s169
      %vm172 = vcmask 523264
      %173 = vst.msk [vmem:[#allocation2] sm:$0xff] %vm172, 0.0
      %174 = vst.msk [vmem:[#allocation2 + $0x8] sm:$0xff] %vm172, 0.0
      %175 = vst.msk [vmem:[#allocation2 + $0x10] sm:$0xff] %vm172, 0.0
      %v176 = vld [vmem:[%s165] sm:$0xff]
      %v177 = vld [vmem:[%s165 + $0x8] sm:$0xff]
      %178 = vst.msk [vmem:[#allocation2 + $0x1] sm:$0xff] %vm172, %v176
      %179 = vst.msk [vmem:[#allocation2 + $0x9] sm:$0xff] %vm172, %v177
      %v180 = vld [vmem:[#allocation2] sm:$0xff]
      %v181 = vld [vmem:[#allocation2 + $0x8] sm:$0xff]
      %v182 = vpack.c.bf16 %v181, %v180
      %v183 = vld [vmem:[%s1] sm:$0xf]
      %v184 = vld [vmem:[%s1 + $0x4] sm:$0xf]
      %v185 = vld [vmem:[%s1 + $0x8] sm:$0xf]
      %v186 = vld [vmem:[%s1 + $0xc] sm:$0xf]
      %v187 = vld [vmem:[%s1 + $0x10] sm:$0xf]
      %v188 = vld [vmem:[%s1 + $0x14] sm:$0xf]
      %v189 = vld [vmem:[%s1 + $0x18] sm:$0xf]
      %v190 = vld [vmem:[%s1 + $0x1c] sm:$0xf]
      %v191 = vld [vmem:[#allocation2 + $0x1] sm:$0xff]
      %v192 = vld [vmem:[#allocation2 + $0x9] sm:$0xff]
      %v193 = vpack.c.bf16 %v192, %v191
      %s194 = scalar_lea.vmem %s1, 32
      %v195 = vld [vmem:[%s194] sm:$0xf]
      %v196 = vld [vmem:[%s194 + $0x4] sm:$0xf]
      %v197 = vld [vmem:[%s194 + $0x8] sm:$0xf]
      %v198 = vld [vmem:[%s194 + $0xc] sm:$0xf]
      %v199 = vld [vmem:[%s194 + $0x10] sm:$0xf]
      %v200 = vld [vmem:[%s194 + $0x14] sm:$0xf]
      %v201 = vld [vmem:[%s194 + $0x18] sm:$0xf]
      %v202 = vld [vmem:[%s194 + $0x1c] sm:$0xf]
      %v211 = vunpack.c.l.b16 %v195
      %v212 = vunpack.c.l.b16 %v196
      %v213 = vunpack.c.l.b16 %v197
      %v214 = vunpack.c.l.b16 %v198
      %v215 = vunpack.c.l.b16 %v199
      %v216 = vunpack.c.l.b16 %v200
      %v217 = vunpack.c.l.b16 %v201
      %v218 = vunpack.c.l.b16 %v202
      %v219 = vpack.c.b16 %v212, %v211
      %v220 = vpack.c.b16 %v214, %v213
      %v221 = vpack.c.b16 %v216, %v215
      %v222 = vpack.c.b16 %v218, %v217
      %v228 = vsel %vm172, %v193, 0
      %230 = vmatprep.subr.bf16.mxu0 0
      %231 = vmatpush1.bf16.msra.mxu0 0
      %232 = vmatprep.subr.bf16.mxu0 0
      %233 = vmatpush1.bf16.msra.mxu0 0
      %234 = vmatprep.subr.bf16.mxu0 0
      %235 = vmatpush1.bf16.msra.mxu0 0
      %236 = vmatprep.subr.bf16.mxu0 0
      %237 = vmatpush1.bf16.msra.mxu0 0
      %238 = vmatprep.subr.bf16.mxu0 0
      %239 = vmatpush1.bf16.msra.mxu0 %v222
      %240 = vmatprep.subr.bf16.mxu0 0
      %241 = vmatpush1.bf16.msra.mxu0 %v221
      %242 = vmatprep.subr.bf16.mxu0 0
      %243 = vmatpush1.bf16.msra.mxu0 %v220
      %244 = vmatprep.subr.bf16.mxu0 0
      %245 = vmatpush1.bf16.msra.mxu0 %v219
      %246 = vmatprep.subr.bf16.mxu0 0
      %247 = vmatpush2.bf16.msra.mxu0 0
      %248 = vmatprep.subr.bf16.mxu0 0
      %249 = vmatpush2.bf16.msra.mxu0 0
      %250 = vmatprep.subr.bf16.mxu0 0
      %251 = vmatpush2.bf16.msra.mxu0 0
      %252 = vmatprep.subr.bf16.mxu0 0
      %253 = vmatpush2.bf16.msra.mxu0 0
      %254 = vmatprep.subr.bf16.mxu0 0
      %255 = vmatpush2.bf16.msra.mxu0 0
      %256 = vmatprep.subr.bf16.mxu0 0
      %257 = vmatpush2.bf16.msra.mxu0 0
      %258 = vmatprep.subr.bf16.mxu0 0
      %259 = vmatpush2.bf16.msra.mxu0 0
      %260 = vmatprep.subr.bf16.mxu0 0
      %261 = vmatpush2.bf16.msra.mxu0 0
      %262 = vmatprep.mubr.bf16.mxu0 0
      %263 = vmatmul.mubr.bf16.gmra.mxu0 %v228
      %v264 = vpop.f32.mrf.mxu0
      %v265 = vadd.f32 0.0, %v264
      %v266 = vpop.f32.mrf.mxu0
      %v267 = vpop.f32.mrf.mxu0
      %v268 = vadd.f32 0.0, %v267
      %v269 = vpop.f32.mrf.mxu0
      %270 = vdwg.mxu0
      %v279 = vunpack.c.l.b16 %v183
      %v280 = vunpack.c.l.b16 %v184
      %v281 = vunpack.c.l.b16 %v185
      %v282 = vunpack.c.l.b16 %v186
      %v283 = vunpack.c.l.b16 %v187
      %v284 = vunpack.c.l.b16 %v188
      %v285 = vunpack.c.l.b16 %v189
      %v286 = vunpack.c.l.b16 %v190
      %v287 = vpack.c.b16 %v280, %v279
      %v288 = vpack.c.b16 %v282, %v281
      %v289 = vpack.c.b16 %v284, %v283
      %v290 = vpack.c.b16 %v286, %v285
      %v296 = vsel %vm172, %v182, 0
      %298 = vmatprep.subr.bf16.mxu0 0
      %299 = vmatpush1.bf16.msra.mxu0 0
      %300 = vmatprep.subr.bf16.mxu0 0
      %301 = vmatpush1.bf16.msra.mxu0 0
      %302 = vmatprep.subr.bf16.mxu0 0
      %303 = vmatpush1.bf16.msra.mxu0 0
      %304 = vmatprep.subr.bf16.mxu0 0
      %305 = vmatpush1.bf16.msra.mxu0 0
      %306 = vmatprep.subr.bf16.mxu0 0
      %307 = vmatpush1.bf16.msra.mxu0 %v290
      %308 = vmatprep.subr.bf16.mxu0 0
      %309 = vmatpush1.bf16.msra.mxu0 %v289
      %310 = vmatprep.subr.bf16.mxu0 0
      %311 = vmatpush1.bf16.msra.mxu0 %v288
      %312 = vmatprep.subr.bf16.mxu0 0
      %313 = vmatpush1.bf16.msra.mxu0 %v287
      %314 = vmatprep.subr.bf16.mxu0 0
      %315 = vmatpush2.bf16.msra.mxu0 0
      %316 = vmatprep.subr.bf16.mxu0 0
      %317 = vmatpush2.bf16.msra.mxu0 0
      %318 = vmatprep.subr.bf16.mxu0 0
      %319 = vmatpush2.bf16.msra.mxu0 0
      %320 = vmatprep.subr.bf16.mxu0 0
      %321 = vmatpush2.bf16.msra.mxu0 0
      %322 = vmatprep.subr.bf16.mxu0 0
      %323 = vmatpush2.bf16.msra.mxu0 0
      %324 = vmatprep.subr.bf16.mxu0 0
      %325 = vmatpush2.bf16.msra.mxu0 0
      %326 = vmatprep.subr.bf16.mxu0 0
      %327 = vmatpush2.bf16.msra.mxu0 0
      %328 = vmatprep.subr.bf16.mxu0 0
      %329 = vmatpush2.bf16.msra.mxu0 0
      %330 = vmatprep.mubr.bf16.mxu0 0
      %331 = vmatmul.mubr.bf16.gmra.mxu0 %v296
      %v332 = vpop.f32.mrf.mxu0
      %v333 = vadd.f32 %v265, %v332
      %v334 = vpop.f32.mrf.mxu0
      %v335 = vpop.f32.mrf.mxu0
      %v336 = vadd.f32 %v268, %v335
      %v337 = vpop.f32.mrf.mxu0
      %338 = vdwg.mxu0
      %v339 = vld [vmem:[#allocation2 + $0x2] sm:$0xff]
      %v340 = vld [vmem:[#allocation2 + $0xa] sm:$0xff]
      %v341 = vpack.c.bf16 %v340, %v339
      %s342 = scalar_lea.vmem %s1, 64
      %v343 = vld [vmem:[%s342] sm:$0xf]
      %v344 = vld [vmem:[%s342 + $0x4] sm:$0xf]
      %v345 = vld [vmem:[%s342 + $0x8] sm:$0xf]
      %v346 = vld [vmem:[%s342 + $0xc] sm:$0xf]
      %v347 = vld [vmem:[%s342 + $0x10] sm:$0xf]
      %v348 = vld [vmem:[%s342 + $0x14] sm:$0xf]
      %v349 = vld [vmem:[%s342 + $0x18] sm:$0xf]
      %v350 = vld [vmem:[%s342 + $0x1c] sm:$0xf]
      %v359 = vunpack.c.l.b16 %v343
      %v360 = vunpack.c.l.b16 %v344
      %v361 = vunpack.c.l.b16 %v345
      %v362 = vunpack.c.l.b16 %v346
      %v363 = vunpack.c.l.b16 %v347
      %v364 = vunpack.c.l.b16 %v348
      %v365 = vunpack.c.l.b16 %v349
      %v366 = vunpack.c.l.b16 %v350
      %v367 = vpack.c.b16 %v360, %v359
      %v368 = vpack.c.b16 %v362, %v361
      %v369 = vpack.c.b16 %v364, %v363
      %v370 = vpack.c.b16 %v366, %v365
      %v376 = vsel %vm172, %v341, 0
      %378 = vmatprep.subr.bf16.mxu0 0
      %379 = vmatpush1.bf16.msra.mxu0 0
      %380 = vmatprep.subr.bf16.mxu0 0
      %381 = vmatpush1.bf16.msra.mxu0 0
      %382 = vmatprep.subr.bf16.mxu0 0
      %383 = vmatpush1.bf16.msra.mxu0 0
      %384 = vmatprep.subr.bf16.mxu0 0
      %385 = vmatpush1.bf16.msra.mxu0 0
      %386 = vmatprep.subr.bf16.mxu0 0
      %387 = vmatpush1.bf16.msra.mxu0 %v370
      %388 = vmatprep.subr.bf16.mxu0 0
      %389 = vmatpush1.bf16.msra.mxu0 %v369
      %390 = vmatprep.subr.bf16.mxu0 0
      %391 = vmatpush1.bf16.msra.mxu0 %v368
      %392 = vmatprep.subr.bf16.mxu0 0
      %393 = vmatpush1.bf16.msra.mxu0 %v367
      %394 = vmatprep.subr.bf16.mxu0 0
      %395 = vmatpush2.bf16.msra.mxu0 0
      %396 = vmatprep.subr.bf16.mxu0 0
      %397 = vmatpush2.bf16.msra.mxu0 0
      %398 = vmatprep.subr.bf16.mxu0 0
      %399 = vmatpush2.bf16.msra.mxu0 0
      %400 = vmatprep.subr.bf16.mxu0 0
      %401 = vmatpush2.bf16.msra.mxu0 0
      %402 = vmatprep.subr.bf16.mxu0 0
      %403 = vmatpush2.bf16.msra.mxu0 0
      %404 = vmatprep.subr.bf16.mxu0 0
      %405 = vmatpush2.bf16.msra.mxu0 0
      %406 = vmatprep.subr.bf16.mxu0 0
      %407 = vmatpush2.bf16.msra.mxu0 0
      %408 = vmatprep.subr.bf16.mxu0 0
      %409 = vmatpush2.bf16.msra.mxu0 0
      %410 = vmatprep.mubr.bf16.mxu0 0
      %411 = vmatmul.mubr.bf16.gmra.mxu0 %v376
      %v412 = vpop.f32.mrf.mxu0
      %v413 = vadd.f32 0.0, %v412
      %v414 = vpop.f32.mrf.mxu0
      %v415 = vpop.f32.mrf.mxu0
      %v416 = vadd.f32 0.0, %v415
      %v417 = vpop.f32.mrf.mxu0
      %418 = vdwg.mxu0
      %v419 = vadd.f32 %v333, %v413
      %v420 = vadd.f32 %v336, %v416
      %v421 = vld [vmem:[%s2] sm:$0x1]
      %v423 = vlaneseq
      %v424 = vshrl.u32 %v423, 7
      %v425 = vsub.s32 0, %v424
      %v426 = vrot.slane %v421, %v425
      %v428 = vadd.f32 %v419, %v426
      %v429 = vadd.f32 %v420, %v426
      %430 = vst [vmem:[%s170] sm:$0xff] %v428
      %431 = vst [vmem:[%s170 + $0x8] sm:$0xff] %v429
      %p432 = scmp.lt.s32.totalorder %s14, 1
      %s433 = scalar_select %p432, %s14, 1
      %s434 = smul.addr %s433, 2
      %s435 = smul.addr %s434, 8
      %s436 = scalar_lea.vmem %s3, %s435
      // Predicated region
      $region33: #{_gauge_conv_impl.1} parent=31 // pred_check
        %p437 = pneg %p100
      $region34: #{_gauge_conv_impl.1} parent=31 // pred_check_branch
        %439 = sbr.rel (%p437) target = $region36
      $region35: #{_gauge_conv_impl.1} parent=31 // pred_region
        _
      $region36: #{_gauge_conv_impl.1} parent=31 // pred_fallthru
        _
    $region32: #{_gauge_conv_impl.1} parent=5 // pred_fallthru
      _
    %p440 = scmp.le.s32.totalorder 2, %s9
    // Predicated region
    $region37: #{_gauge_conv_impl.1} parent=5 // pred_check
      %p441 = pneg %p440
    $region38: #{_gauge_conv_impl.1} parent=5 // pred_check_branch
      %443 = sbr.rel (%p441) target = $region40
    $region39: #{_gauge_conv_impl.1} parent=5 // pred_region
      %s444 = ssub.s32 %s9, 2
      // Predicated region
      $region41: #{_gauge_conv_impl.1} parent=39 // pred_check
        %p445 = pneg %p106
      $region42: #{_gauge_conv_impl.1} parent=39 // pred_check_branch
        %447 = sbr.rel (%p445) target = $region44
      $region43: #{_gauge_conv_impl.1} parent=39 // pred_region
        %p448 = scmp.lt.s32.totalorder %s15, 1
        %s449 = scalar_select %p448, %s15, 1
        %s450 = smul.addr %s449, 2
        %s451 = smul.addr %s450, 8
        %s452 = scalar_lea.vmem %s3, %s451
      $region44: #{_gauge_conv_impl.1} parent=39 // pred_fallthru
        _
    $region40: #{_gauge_conv_impl.1} parent=5 // pred_fallthru
      _
  $region6: #{_gauge_conv_impl.1} parent=0 // loop_footer
    %s13 = sadd.s32 1, %s9
  $region7: #{_gauge_conv_impl.1} parent=0 // loop_footer_branch
    %8 = sbr.rel target = $region3
  $region8: #{_gauge_conv_impl.1} parent=0 // loop_exit
    _

</llo_original>
